<compile_context>
chip_gen: v7x
topology: tpu7x:2x2x1
jax: 0.10.0
libtpu: 0.0.40
codegen_flags: <defaults>
</compile_context>

<pallas_src>
import jax
import jax.numpy as jnp
from jax.experimental import pallas as pl
from jax.experimental.pallas import tpu as pltpu

_LANE = 128
_W_ROWS = 8                              # replicate w to a full sublane group
_PHI_BLOCK_BYTES = 12 * 1024 * 1024      # per-tile phi budget (double-buffered)
_VMEM_LIMIT_BYTES = 48 * 1024 * 1024


def task_vector_kernel(phi_ref, w_ref, o_ref):
    # phi_ref: VMEM (TB, D)  native dtype (f32 or bf16), streamed per tile
    # w_ref:   VMEM (8, D)   normalized weight slab, resident across the grid
    # o_ref:   VMEM (8, TB)  f32, lane-dense (all 8 rows are identical copies)
    precision = (
        jax.lax.Precision.HIGHEST if phi_ref.dtype == jnp.float32 else None
    )
    # (8, D) x (TB, D) contracted on D -> (8, TB), computed on the MXU.
    o_ref[...] = jax.lax.dot_general(
        w_ref[...],
        phi_ref[...],
        dimension_numbers=(((1,), (1,)), ((), ())),
        precision=precision,
        preferred_element_type=jnp.float32,
    )


def _round_down(x, m):
    return (x // m) * m


def _round_up(x, m):
    return ((x + m - 1) // m) * m


def _choose_tb(batch, dim, itemsize):
    """Batch-tile rows: lane-aligned, VMEM-bounded, >=2 tiles when possible."""
    if batch <= _LANE:
        # Single full-array tile (block_shape == array shape is always legal).
        return batch
    # Largest lane-aligned tile within the per-block byte budget.
    max_rows = max(
        _LANE, _round_down(_PHI_BLOCK_BYTES // max(1, dim * itemsize), _LANE)
    )
    # Keep at least two tiles so both TensorCores get work on dual-TC parts.
    half_rows = max(_LANE, _round_down(batch // 2, _LANE))
    tb = min(max_rows, half_rows)
    # Best-effort: prefer an even number of tiles (megacore load balance).
    nt = pl.cdiv(batch, tb)
    if nt > 1 and nt % 2 == 1:
        tb_even = _round_up(pl.cdiv(batch, nt + 1), _LANE)
        if _LANE <= tb_even < tb:
            tb = tb_even
    return tb


@jax.jit
def task_vector_forward(phi_next, w):
    """phi_next: (B, D) f32/bf16, w: (D,) f32 -> (B,) f32."""
    # TODO(synk): at the shipped size (B=8, D=32) a standalone pallas_call is
    # pure dispatch overhead -- fuse into the surrounding computation or stack
    # many task vectors/heads into a (D, H) RHS and do one (TB, D) @ (D, H)
    # MXU pass; the kernel below targets the general (large-B) case.
    B, D = phi_next.shape
    w_f32 = w.astype(jnp.float32)
    # Exact PyTorch semantics, folded into the weight (free, O(D), in wrapper).
    w_norm = w_f32 / (jnp.sqrt(jnp.sum(w_f32 * w_f32)) + 1e-8)
    # Replicate to a full sublane group and match phi's dtype so the MXU sees
    # same-dtype operands (bf16 phi => bf16 weight, f32 accumulation).
    w_slab = jnp.broadcast_to(w_norm[None, :], (_W_ROWS, D)).astype(phi_next.dtype)

    tb = _choose_tb(B, D, phi_next.dtype.itemsize)
    num_tiles = pl.cdiv(B, tb)

    out = pl.pallas_call(
        task_vector_kernel,
        out_shape=jax.ShapeDtypeStruct((_W_ROWS, num_tiles * tb), jnp.float32),
        grid_spec=pl.GridSpec(
            grid=(num_tiles,),
            in_specs=[
                # phi: one (tb, D) row-tile per grid step (pipelined).
                pl.BlockSpec((tb, D), lambda i: (i, 0)),
                # w: constant index_map -> stays resident in VMEM.
                pl.BlockSpec((_W_ROWS, D), lambda i: (0, 0)),
            ],
            out_specs=pl.BlockSpec((_W_ROWS, tb), lambda i: (0, i)),
        ),
        compiler_params=pltpu.CompilerParams(
            dimension_semantics=("parallel",),
            vmem_limit_bytes=_VMEM_LIMIT_BYTES,
        ),
    )(phi_next, w_slab)

    # Row 0 of the replicated result; drop padding from the last partial tile.
    return out[0, :B]


def _reference(phi_next, w):
    """Plain-JAX reference matching the kernel's dtype handling."""
    w_f32 = w.astype(jnp.float32)
    w_norm = w_f32 / (jnp.linalg.norm(w_f32) + 1e-8)
    w_cast = w_norm.astype(phi_next.dtype).astype(jnp.float32)
    return jnp.sum(phi_next.astype(jnp.float32) * w_cast[None, :], axis=-1)


if __name__ == "__main__":
    key = jax.random.PRNGKey(0)
    k_w, k_phi = jax.random.split(key)

    # Shipped TaskVector shape from cleanrl/dqn3.py usage: dim=32, batch=8.
    dim, batch = 32, 8
    w = jax.random.normal(k_w, (dim,), dtype=jnp.float32)
    phi_next = jax.random.normal(k_phi, (batch, dim), dtype=jnp.float32)

    out = jax.block_until_ready(task_vector_forward(phi_next, w))
    assert out.shape == (batch,)
    assert jnp.allclose(out, _reference(phi_next, w), atol=2e-3, rtol=2e-3)

    # Exercise the tiled (multi-block, megacore-parallel) path.
    k_w2, k_phi2 = jax.random.split(jax.random.PRNGKey(1))
    w2 = jax.random.normal(k_w2, (256,), dtype=jnp.float32)
    phi2 = jax.random.normal(k_phi2, (512, 256), dtype=jnp.float32)
    out2 = jax.block_until_ready(task_vector_forward(phi2, w2))
    assert out2.shape == (512,)
    assert jnp.allclose(out2, _reference(phi2, w2), atol=2e-3, rtol=2e-3)

    # Exercise the native-bf16 streaming path (half the HBM bytes).
    phi3 = phi2.astype(jnp.bfloat16)
    out3 = jax.block_until_ready(task_vector_forward(phi3, w2))
    assert out3.shape == (512,)
    assert jnp.allclose(out3, _reference(phi3, w2), atol=1e-2, rtol=1e-2)

    print("KERNEL_OK")
</pallas_src>

<mosaic_0001>
module attributes {stable_mosaic.version = 11 : i64} {
  func.func @task_vector_kernel(%arg0: i32, %arg1: memref<8x32xf32, #tpu.memory_space<vmem>>, %arg2: memref<8x32xf32, #tpu.memory_space<vmem>>, %arg3: memref<8x8xf32, #tpu.memory_space<vmem>>) attributes {dimension_semantics = [#tpu.dimension_semantics<parallel>], iteration_bounds = array<i64: 1>, scalar_prefetch = 0 : i64, scratch_operands = 0 : i64, tpu.core_type = #tpu.core_type<tc>, window_params = [{transform_indices = @transform_0, window_bounds = array<i64: 8, 32>}, {pipeline_mode = #tpu.pipeline_mode<synchronous>, transform_indices = @transform_1, window_bounds = array<i64: 8, 32>}, {transform_indices = @transform_2, window_bounds = array<i64: 8, 8>}]} {
    %c0 = arith.constant 0 : index
    %c0_0 = arith.constant 0 : index
    %0 = vector.load %arg2[%c0, %c0_0] : memref<8x32xf32, #tpu.memory_space<vmem>>, vector<8x32xf32>
    %c0_1 = arith.constant 0 : index
    %c0_2 = arith.constant 0 : index
    %1 = vector.load %arg1[%c0_1, %c0_2] : memref<8x32xf32, #tpu.memory_space<vmem>>, vector<8x32xf32>
    %cst = arith.constant dense<0.000000e+00> : vector<8x8xf32>
    %2 = tpu.matmul %0, %1, %cst {dimension_numbers = #tpu.dot_dimension_numbers<[1], [1], [0], [0], [0, 0, 1, 0], [], []>, precision = #tpu.contract_precision<fp32>} : vector<8x32xf32>, vector<8x32xf32>, vector<8x8xf32> -> vector<8x8xf32>
    %c0_3 = arith.constant 0 : index
    %c0_4 = arith.constant 0 : index
    %3 = vector.load %arg3[%c0_3, %c0_4] : memref<8x8xf32, #tpu.memory_space<vmem>>, vector<8x8xf32>
    tpu.vector_store %arg3[%c0_3, %c0_4], %2 {strides = array<i32>} : memref<8x8xf32, #tpu.memory_space<vmem>>, vector<8x8xf32>,
    return
  }
  func.func @transform_0(%arg0: i32) -> (i32, i32) {
    %c0_i32 = arith.constant 0 : i32
    %c0_i32_0 = arith.constant 0 : i32
    return %arg0, %c0_i32 : i32, i32
  }
  func.func @transform_1(%arg0: i32) -> (i32, i32) {
    %c0_i32 = arith.constant 0 : i32
    %c0_i32_0 = arith.constant 0 : i32
    %c0_i32_1 = arith.constant 0 : i32
    return %c0_i32, %c0_i32_0 : i32, i32
  }
  func.func @transform_2(%arg0: i32) -> (i32, i32) {
    %c0_i32 = arith.constant 0 : i32
    %c0_i32_0 = arith.constant 0 : i32
    return %c0_i32, %arg0 : i32, i32
  }
}

</mosaic_0001>

<llo_original>
// kernel: task_vector_forward.1
$region0: #{task_vector_forward.1}
  #allocation0 [shape = 'u32[]', space=smem, size = 0x4, offset = 0x4, fixed_abs, tag = 'smem constant byte address 0x4 - core index']
  #allocation1 [shape = 'u32[144,128]{1,0:T(1,128)}', space=vmem, size = 0x12000, scoped, tag = 'internal scratch']
  %s0 = inlined_call_operand.vmem [shape: f32[8,32], index: 0, kind: input, shape index: {}]
  %s1 = inlined_call_operand.vmem [shape: f32[8,32], index: 1, kind: input, shape index: {}]
  %s2 = inlined_call_operand.vmem [shape: f32[8,8], index: 2, kind: output, shape index: {}]
  %s3 = sld [smem:[#allocation0]]
  $region18: #{task_vector_forward.1} parent=0
    _
  %s5 = ssub.s32 1, %s3
  %s6 = scalar_select 0, %s5, %s3
  // Predicated region
  $region2: #{task_vector_forward.1} parent=0 // pred_check
    _
  $region3: #{task_vector_forward.1} parent=0 // pred_check_branch
    %8 = sbr.rel (0) target = $region5
  $region4: #{task_vector_forward.1} parent=0 // pred_region
    _
  $region5: #{task_vector_forward.1} parent=0 // pred_fallthru
    _
  // Predicated region
  $region6: #{task_vector_forward.1} parent=0 // pred_check
    _
  $region7: #{task_vector_forward.1} parent=0 // pred_check_branch
    %10 = sbr.rel (0) target = $region9
  $region8: #{task_vector_forward.1} parent=0 // pred_region
    _
  $region9: #{task_vector_forward.1} parent=0 // pred_fallthru
    _
  %v11 = vld [vmem:[%s1] sm:$0xff]
  %v12 = vld [vmem:[%s0] sm:$0xff]
  %vm13 = vcmask 261120
  %v15 = vsel %vm13, %v11, 0
  %v18 = vsel %vm13, %v12, 0
  %20 = vmatprep.subr.mxu0 0.0
  %v21 = vand.u32 %v18, 4294901760
  %22 = vmatpush1.xpose.msra.mxu0 %v21
  %23 = vmatprep.subr.mxu0 0.0
  %24 = vmatpush1.xpose.msra.mxu0 0.0
  %25 = vmatprep.subr.mxu0 0.0
  %26 = vmatpush1.xpose.msra.mxu0 0.0
  %27 = vmatprep.subr.mxu0 0.0
  %28 = vmatpush1.xpose.msra.mxu0 0.0
  %29 = vmatprep.subr.mxu0 0.0
  %30 = vmatpush1.xpose.msra.mxu0 0.0
  %31 = vmatprep.subr.mxu0 0.0
  %32 = vmatpush1.xpose.msra.mxu0 0.0
  %33 = vmatprep.subr.mxu0 0.0
  %34 = vmatpush1.xpose.msra.mxu0 0.0
  %35 = vmatprep.subr.mxu0 0.0
  %36 = vmatpush1.xpose.msra.mxu0 0.0
  %37 = vmatprep.subr.mxu0 0.0
  %38 = vmatpush1.xpose.msra.mxu0 0.0
  %39 = vmatprep.subr.mxu0 0.0
  %40 = vmatpush1.xpose.msra.mxu0 0.0
  %41 = vmatprep.subr.mxu0 0.0
  %42 = vmatpush1.xpose.msra.mxu0 0.0
  %43 = vmatprep.subr.mxu0 0.0
  %44 = vmatpush1.xpose.msra.mxu0 0.0
  %45 = vmatprep.subr.mxu0 0.0
  %46 = vmatpush1.xpose.msra.mxu0 0.0
  %47 = vmatprep.subr.mxu0 0.0
  %48 = vmatpush1.xpose.msra.mxu0 0.0
  %49 = vmatprep.subr.mxu0 0.0
  %50 = vmatpush1.xpose.msra.mxu0 0.0
  %51 = vmatprep.subr.mxu0 0.0
  %52 = vmatpush1.xpose.msra.mxu0 0.0
  %53 = vmatprep.subr.mxu0 0.0
  %54 = vmatpush1.xpose.msra.mxu0 0.0
  %55 = vmatprep.subr.mxu0 0.0
  %56 = vmatpush1.xpose.msra.mxu0 0.0
  %57 = vmatprep.subr.mxu0 0.0
  %58 = vmatpush1.xpose.msra.mxu0 0.0
  %59 = vmatprep.subr.mxu0 0.0
  %60 = vmatpush1.xpose.msra.mxu0 0.0
  %61 = vmatprep.subr.mxu0 0.0
  %62 = vmatpush1.xpose.msra.mxu0 0.0
  %63 = vmatprep.subr.mxu0 0.0
  %64 = vmatpush1.xpose.msra.mxu0 0.0
  %65 = vmatprep.subr.mxu0 0.0
  %66 = vmatpush1.xpose.msra.mxu0 0.0
  %67 = vmatprep.subr.mxu0 0.0
  %68 = vmatpush1.xpose.msra.mxu0 0.0
  %69 = vmatprep.subr.mxu0 0.0
  %70 = vmatpush1.xpose.msra.mxu0 0.0
  %71 = vmatprep.subr.mxu0 0.0
  %72 = vmatpush1.xpose.msra.mxu0 0.0
  %73 = vmatprep.subr.mxu0 0.0
  %74 = vmatpush1.xpose.msra.mxu0 0.0
  %75 = vmatprep.subr.mxu0 0.0
  %76 = vmatpush1.xpose.msra.mxu0 0.0
  %77 = vmatprep.subr.mxu0 0.0
  %78 = vmatpush1.xpose.msra.mxu0 0.0
  %79 = vmatprep.subr.mxu0 0.0
  %80 = vmatpush1.xpose.msra.mxu0 0.0
  %81 = vmatprep.subr.mxu0 0.0
  %82 = vmatpush1.xpose.msra.mxu0 0.0
  %83 = vmatprep.subr.mxu0 0.0
  %84 = vmatpush1.xpose.msra.mxu0 0.0
  %85 = vmatprep.mubr.f32.mxu0 0.0
  %v86 = vand.u32 %v15, 4294901760
  %v87 = vsub.f32 %v15, %v86
  %v88 = vand.u32 %v87, 4294901760
  %v89 = vsub.f32 %v87, %v88
  %v90 = vand.u32 %v89, 4294901760
  %91 = vmatmul.mubr.f32.gmra.mrb[0].mxu0 %v90
  %v92 = vpop.f32.mrb[0].mxu0
  %v93 = vadd.f32 0.0, %v92
  %v94 = vpop.f32.mrb[0].mxu0
  %95 = vdwg.mxu0
  %96 = vmatprep.subr.mxu0 0.0
  %v97 = vand.u32 %v18, 4294901760
  %v98 = vsub.f32 %v18, %v97
  %v99 = vand.u32 %v98, 4294901760
  %v100 = vsub.f32 %v98, %v99
  %v101 = vand.u32 %v100, 4294901760
  %102 = vmatpush1.xpose.msra.mxu0 %v101
  %103 = vmatprep.subr.mxu0 0.0
  %104 = vmatpush1.xpose.msra.mxu0 0.0
  %105 = vmatprep.subr.mxu0 0.0
  %106 = vmatpush1.xpose.msra.mxu0 0.0
  %107 = vmatprep.subr.mxu0 0.0
  %108 = vmatpush1.xpose.msra.mxu0 0.0
  %109 = vmatprep.subr.mxu0 0.0
  %110 = vmatpush1.xpose.msra.mxu0 0.0
  %111 = vmatprep.subr.mxu0 0.0
  %112 = vmatpush1.xpose.msra.mxu0 0.0
  %113 = vmatprep.subr.mxu0 0.0
  %114 = vmatpush1.xpose.msra.mxu0 0.0
  %115 = vmatprep.subr.mxu0 0.0
  %116 = vmatpush1.xpose.msra.mxu0 0.0
  %117 = vmatprep.subr.mxu0 0.0
  %118 = vmatpush1.xpose.msra.mxu0 0.0
  %119 = vmatprep.subr.mxu0 0.0
  %120 = vmatpush1.xpose.msra.mxu0 0.0
  %121 = vmatprep.subr.mxu0 0.0
  %122 = vmatpush1.xpose.msra.mxu0 0.0
  %123 = vmatprep.subr.mxu0 0.0
  %124 = vmatpush1.xpose.msra.mxu0 0.0
  %125 = vmatprep.subr.mxu0 0.0
  %126 = vmatpush1.xpose.msra.mxu0 0.0
  %127 = vmatprep.subr.mxu0 0.0
  %128 = vmatpush1.xpose.msra.mxu0 0.0
  %129 = vmatprep.subr.mxu0 0.0
  %130 = vmatpush1.xpose.msra.mxu0 0.0
  %131 = vmatprep.subr.mxu0 0.0
  %132 = vmatpush1.xpose.msra.mxu0 0.0
  %133 = vmatprep.subr.mxu0 0.0
  %134 = vmatpush1.xpose.msra.mxu0 0.0
  %135 = vmatprep.subr.mxu0 0.0
  %136 = vmatpush1.xpose.msra.mxu0 0.0
  %137 = vmatprep.subr.mxu0 0.0
  %138 = vmatpush1.xpose.msra.mxu0 0.0
  %139 = vmatprep.subr.mxu0 0.0
  %140 = vmatpush1.xpose.msra.mxu0 0.0
  %141 = vmatprep.subr.mxu0 0.0
  %142 = vmatpush1.xpose.msra.mxu0 0.0
  %143 = vmatprep.subr.mxu0 0.0
  %144 = vmatpush1.xpose.msra.mxu0 0.0
  %145 = vmatprep.subr.mxu0 0.0
  %146 = vmatpush1.xpose.msra.mxu0 0.0
  %147 = vmatprep.subr.mxu0 0.0
  %148 = vmatpush1.xpose.msra.mxu0 0.0
  %149 = vmatprep.subr.mxu0 0.0
  %150 = vmatpush1.xpose.msra.mxu0 0.0
  %151 = vmatprep.subr.mxu0 0.0
  %152 = vmatpush1.xpose.msra.mxu0 0.0
  %153 = vmatprep.subr.mxu0 0.0
  %154 = vmatpush1.xpose.msra.mxu0 0.0
  %155 = vmatprep.subr.mxu0 0.0
  %156 = vmatpush1.xpose.msra.mxu0 0.0
  %157 = vmatprep.subr.mxu0 0.0
  %158 = vmatpush1.xpose.msra.mxu0 0.0
  %159 = vmatprep.subr.mxu0 0.0
  %160 = vmatpush1.xpose.msra.mxu0 0.0
  %161 = vmatprep.subr.mxu0 0.0
  %162 = vmatpush1.xpose.msra.mxu0 0.0
  %163 = vmatprep.subr.mxu0 0.0
  %164 = vmatpush1.xpose.msra.mxu0 0.0
  %165 = vmatprep.mubr.f32.mxu0 0.0
  %v166 = vand.u32 %v15, 4294901760
  %167 = vmatmul.mubr.f32.gmra.mrb[0].mxu0 %v166
  %v168 = vpop.f32.mrb[0].mxu0
  %v169 = vadd.f32 %v93, %v168
  %v170 = vpop.f32.mrb[0].mxu0
  %171 = vdwg.mxu0
  %172 = vmatprep.subr.mxu0 0.0
  %v173 = vand.u32 %v18, 4294901760
  %v174 = vsub.f32 %v18, %v173
  %175 = vmatpush1.xpose.msra.mxu0 %v174
  %176 = vmatprep.subr.mxu0 0.0
  %177 = vmatpush1.xpose.msra.mxu0 0.0
  %178 = vmatprep.subr.mxu0 0.0
  %179 = vmatpush1.xpose.msra.mxu0 0.0
  %180 = vmatprep.subr.mxu0 0.0
  %181 = vmatpush1.xpose.msra.mxu0 0.0
  %182 = vmatprep.subr.mxu0 0.0
  %183 = vmatpush1.xpose.msra.mxu0 0.0
  %184 = vmatprep.subr.mxu0 0.0
  %185 = vmatpush1.xpose.msra.mxu0 0.0
  %186 = vmatprep.subr.mxu0 0.0
  %187 = vmatpush1.xpose.msra.mxu0 0.0
  %188 = vmatprep.subr.mxu0 0.0
  %189 = vmatpush1.xpose.msra.mxu0 0.0
  %190 = vmatprep.subr.mxu0 0.0
  %191 = vmatpush1.xpose.msra.mxu0 0.0
  %192 = vmatprep.subr.mxu0 0.0
  %193 = vmatpush1.xpose.msra.mxu0 0.0
  %194 = vmatprep.subr.mxu0 0.0
  %195 = vmatpush1.xpose.msra.mxu0 0.0
  %196 = vmatprep.subr.mxu0 0.0
  %197 = vmatpush1.xpose.msra.mxu0 0.0
  %198 = vmatprep.subr.mxu0 0.0
  %199 = vmatpush1.xpose.msra.mxu0 0.0
  %200 = vmatprep.subr.mxu0 0.0
  %201 = vmatpush1.xpose.msra.mxu0 0.0
  %202 = vmatprep.subr.mxu0 0.0
  %203 = vmatpush1.xpose.msra.mxu0 0.0
  %204 = vmatprep.subr.mxu0 0.0
  %205 = vmatpush1.xpose.msra.mxu0 0.0
  %206 = vmatprep.subr.mxu0 0.0
  %207 = vmatpush1.xpose.msra.mxu0 0.0
  %208 = vmatprep.subr.mxu0 0.0
  %209 = vmatpush1.xpose.msra.mxu0 0.0
  %210 = vmatprep.subr.mxu0 0.0
  %211 = vmatpush1.xpose.msra.mxu0 0.0
  %212 = vmatprep.subr.mxu0 0.0
  %213 = vmatpush1.xpose.msra.mxu0 0.0
  %214 = vmatprep.subr.mxu0 0.0
  %215 = vmatpush1.xpose.msra.mxu0 0.0
  %216 = vmatprep.subr.mxu0 0.0
  %217 = vmatpush1.xpose.msra.mxu0 0.0
  %218 = vmatprep.subr.mxu0 0.0
  %219 = vmatpush1.xpose.msra.mxu0 0.0
  %220 = vmatprep.subr.mxu0 0.0
  %221 = vmatpush1.xpose.msra.mxu0 0.0
  %222 = vmatprep.subr.mxu0 0.0
  %223 = vmatpush1.xpose.msra.mxu0 0.0
  %224 = vmatprep.subr.mxu0 0.0
  %225 = vmatpush1.xpose.msra.mxu0 0.0
  %226 = vmatprep.subr.mxu0 0.0
  %227 = vmatpush1.xpose.msra.mxu0 0.0
  %228 = vmatprep.subr.mxu0 0.0
  %229 = vmatpush1.xpose.msra.mxu0 0.0
  %230 = vmatprep.subr.mxu0 0.0
  %231 = vmatpush1.xpose.msra.mxu0 0.0
  %232 = vmatprep.subr.mxu0 0.0
  %233 = vmatpush1.xpose.msra.mxu0 0.0
  %234 = vmatprep.subr.mxu0 0.0
  %235 = vmatpush1.xpose.msra.mxu0 0.0
  %236 = vmatprep.subr.mxu0 0.0
  %237 = vmatpush1.xpose.msra.mxu0 0.0
  %238 = vmatprep.mubr.f32.mxu0 0.0
  %v239 = vand.u32 %v15, 4294901760
  %v240 = vsub.f32 %v15, %v239
  %241 = vmatmul.mubr.f32.gmra.mrb[0].mxu0 %v240
  %v242 = vpop.f32.mrb[0].mxu0
  %v243 = vadd.f32 %v169, %v242
  %v244 = vpop.f32.mrb[0].mxu0
  %245 = vdwg.mxu0
  %246 = vmatprep.subr.mxu0 0.0
  %v247 = vand.u32 %v18, 4294901760
  %248 = vmatpush1.xpose.msra.mxu0 %v247
  %249 = vmatprep.subr.mxu0 0.0
  %250 = vmatpush1.xpose.msra.mxu0 0.0
  %251 = vmatprep.subr.mxu0 0.0
  %252 = vmatpush1.xpose.msra.mxu0 0.0
  %253 = vmatprep.subr.mxu0 0.0
  %254 = vmatpush1.xpose.msra.mxu0 0.0
  %255 = vmatprep.subr.mxu0 0.0
  %256 = vmatpush1.xpose.msra.mxu0 0.0
  %257 = vmatprep.subr.mxu0 0.0
  %258 = vmatpush1.xpose.msra.mxu0 0.0
  %259 = vmatprep.subr.mxu0 0.0
  %260 = vmatpush1.xpose.msra.mxu0 0.0
  %261 = vmatprep.subr.mxu0 0.0
  %262 = vmatpush1.xpose.msra.mxu0 0.0
  %263 = vmatprep.subr.mxu0 0.0
  %264 = vmatpush1.xpose.msra.mxu0 0.0
  %265 = vmatprep.subr.mxu0 0.0
  %266 = vmatpush1.xpose.msra.mxu0 0.0
  %267 = vmatprep.subr.mxu0 0.0
  %268 = vmatpush1.xpose.msra.mxu0 0.0
  %269 = vmatprep.subr.mxu0 0.0
  %270 = vmatpush1.xpose.msra.mxu0 0.0
  %271 = vmatprep.subr.mxu0 0.0
  %272 = vmatpush1.xpose.msra.mxu0 0.0
  %273 = vmatprep.subr.mxu0 0.0
  %274 = vmatpush1.xpose.msra.mxu0 0.0
  %275 = vmatprep.subr.mxu0 0.0
  %276 = vmatpush1.xpose.msra.mxu0 0.0
  %277 = vmatprep.subr.mxu0 0.0
  %278 = vmatpush1.xpose.msra.mxu0 0.0
  %279 = vmatprep.subr.mxu0 0.0
  %280 = vmatpush1.xpose.msra.mxu0 0.0
  %281 = vmatprep.subr.mxu0 0.0
  %282 = vmatpush1.xpose.msra.mxu0 0.0
  %283 = vmatprep.subr.mxu0 0.0
  %284 = vmatpush1.xpose.msra.mxu0 0.0
  %285 = vmatprep.subr.mxu0 0.0
  %286 = vmatpush1.xpose.msra.mxu0 0.0
  %287 = vmatprep.subr.mxu0 0.0
  %288 = vmatpush1.xpose.msra.mxu0 0.0
  %289 = vmatprep.subr.mxu0 0.0
  %290 = vmatpush1.xpose.msra.mxu0 0.0
  %291 = vmatprep.subr.mxu0 0.0
  %292 = vmatpush1.xpose.msra.mxu0 0.0
  %293 = vmatprep.subr.mxu0 0.0
  %294 = vmatpush1.xpose.msra.mxu0 0.0
  %295 = vmatprep.subr.mxu0 0.0
  %296 = vmatpush1.xpose.msra.mxu0 0.0
  %297 = vmatprep.subr.mxu0 0.0
  %298 = vmatpush1.xpose.msra.mxu0 0.0
  %299 = vmatprep.subr.mxu0 0.0
  %300 = vmatpush1.xpose.msra.mxu0 0.0
  %301 = vmatprep.subr.mxu0 0.0
  %302 = vmatpush1.xpose.msra.mxu0 0.0
  %303 = vmatprep.subr.mxu0 0.0
  %304 = vmatpush1.xpose.msra.mxu0 0.0
  %305 = vmatprep.subr.mxu0 0.0
  %306 = vmatpush1.xpose.msra.mxu0 0.0
  %307 = vmatprep.subr.mxu0 0.0
  %308 = vmatpush1.xpose.msra.mxu0 0.0
  %309 = vmatprep.subr.mxu0 0.0
  %310 = vmatpush1.xpose.msra.mxu0 0.0
  %311 = vmatprep.mubr.f32.mxu0 0.0
  %v312 = vand.u32 %v15, 4294901760
  %v313 = vsub.f32 %v15, %v312
  %v314 = vand.u32 %v313, 4294901760
  %315 = vmatmul.mubr.f32.gmra.mrb[0].mxu0 %v314
  %v316 = vpop.f32.mrb[0].mxu0
  %v317 = vadd.f32 %v243, %v316
  %v318 = vpop.f32.mrb[0].mxu0
  %319 = vdwg.mxu0
  %320 = vmatprep.subr.mxu0 0.0
  %v321 = vand.u32 %v18, 4294901760
  %v322 = vsub.f32 %v18, %v321
  %v323 = vand.u32 %v322, 4294901760
  %324 = vmatpush1.xpose.msra.mxu0 %v323
  %325 = vmatprep.subr.mxu0 0.0
  %326 = vmatpush1.xpose.msra.mxu0 0.0
  %327 = vmatprep.subr.mxu0 0.0
  %328 = vmatpush1.xpose.msra.mxu0 0.0
  %329 = vmatprep.subr.mxu0 0.0
  %330 = vmatpush1.xpose.msra.mxu0 0.0
  %331 = vmatprep.subr.mxu0 0.0
  %332 = vmatpush1.xpose.msra.mxu0 0.0
  %333 = vmatprep.subr.mxu0 0.0
  %334 = vmatpush1.xpose.msra.mxu0 0.0
  %335 = vmatprep.subr.mxu0 0.0
  %336 = vmatpush1.xpose.msra.mxu0 0.0
  %337 = vmatprep.subr.mxu0 0.0
  %338 = vmatpush1.xpose.msra.mxu0 0.0
  %339 = vmatprep.subr.mxu0 0.0
  %340 = vmatpush1.xpose.msra.mxu0 0.0
  %341 = vmatprep.subr.mxu0 0.0
  %342 = vmatpush1.xpose.msra.mxu0 0.0
  %343 = vmatprep.subr.mxu0 0.0
  %344 = vmatpush1.xpose.msra.mxu0 0.0
  %345 = vmatprep.subr.mxu0 0.0
  %346 = vmatpush1.xpose.msra.mxu0 0.0
  %347 = vmatprep.subr.mxu0 0.0
  %348 = vmatpush1.xpose.msra.mxu0 0.0
  %349 = vmatprep.subr.mxu0 0.0
  %350 = vmatpush1.xpose.msra.mxu0 0.0
  %351 = vmatprep.subr.mxu0 0.0
  %352 = vmatpush1.xpose.msra.mxu0 0.0
  %353 = vmatprep.subr.mxu0 0.0
  %354 = vmatpush1.xpose.msra.mxu0 0.0
  %355 = vmatprep.subr.mxu0 0.0
  %356 = vmatpush1.xpose.msra.mxu0 0.0
  %357 = vmatprep.subr.mxu0 0.0
  %358 = vmatpush1.xpose.msra.mxu0 0.0
  %359 = vmatprep.subr.mxu0 0.0
  %360 = vmatpush1.xpose.msra.mxu0 0.0
  %361 = vmatprep.subr.mxu0 0.0
  %362 = vmatpush1.xpose.msra.mxu0 0.0
  %363 = vmatprep.subr.mxu0 0.0
  %364 = vmatpush1.xpose.msra.mxu0 0.0
  %365 = vmatprep.subr.mxu0 0.0
  %366 = vmatpush1.xpose.msra.mxu0 0.0
  %367 = vmatprep.subr.mxu0 0.0
  %368 = vmatpush1.xpose.msra.mxu0 0.0
  %369 = vmatprep.subr.mxu0 0.0
  %370 = vmatpush1.xpose.msra.mxu0 0.0
  %371 = vmatprep.subr.mxu0 0.0
  %372 = vmatpush1.xpose.msra.mxu0 0.0
  %373 = vmatprep.subr.mxu0 0.0
  %374 = vmatpush1.xpose.msra.mxu0 0.0
  %375 = vmatprep.subr.mxu0 0.0
  %376 = vmatpush1.xpose.msra.mxu0 0.0
  %377 = vmatprep.subr.mxu0 0.0
  %378 = vmatpush1.xpose.msra.mxu0 0.0
  %379 = vmatprep.subr.mxu0 0.0
  %380 = vmatpush1.xpose.msra.mxu0 0.0
  %381 = vmatprep.subr.mxu0 0.0
  %382 = vmatpush1.xpose.msra.mxu0 0.0
  %383 = vmatprep.subr.mxu0 0.0
  %384 = vmatpush1.xpose.msra.mxu0 0.0
  %385 = vmatprep.subr.mxu0 0.0
  %386 = vmatpush1.xpose.msra.mxu0 0.0
  %387 = vmatprep.mubr.f32.mxu0 0.0
  %v388 = vand.u32 %v15, 4294901760
  %389 = vmatmul.mubr.f32.gmra.mrb[0].mxu0 %v388
  %v390 = vpop.f32.mrb[0].mxu0
  %v391 = vadd.f32 %v317, %v390
  %v392 = vpop.f32.mrb[0].mxu0
  %393 = vdwg.mxu0
  %394 = vmatprep.subr.mxu0 0.0
  %v395 = vand.u32 %v18, 4294901760
  %396 = vmatpush1.xpose.msra.mxu0 %v395
  %397 = vmatprep.subr.mxu0 0.0
  %398 = vmatpush1.xpose.msra.mxu0 0.0
  %399 = vmatprep.subr.mxu0 0.0
  %400 = vmatpush1.xpose.msra.mxu0 0.0
  %401 = vmatprep.subr.mxu0 0.0
  %402 = vmatpush1.xpose.msra.mxu0 0.0
  %403 = vmatprep.subr.mxu0 0.0
  %404 = vmatpush1.xpose.msra.mxu0 0.0
  %405 = vmatprep.subr.mxu0 0.0
  %406 = vmatpush1.xpose.msra.mxu0 0.0
  %407 = vmatprep.subr.mxu0 0.0
  %408 = vmatpush1.xpose.msra.mxu0 0.0
  %409 = vmatprep.subr.mxu0 0.0
  %410 = vmatpush1.xpose.msra.mxu0 0.0
  %411 = vmatprep.subr.mxu0 0.0
  %412 = vmatpush1.xpose.msra.mxu0 0.0
  %413 = vmatprep.subr.mxu0 0.0
  %414 = vmatpush1.xpose.msra.mxu0 0.0
  %415 = vmatprep.subr.mxu0 0.0
  %416 = vmatpush1.xpose.msra.mxu0 0.0
  %417 = vmatprep.subr.mxu0 0.0
  %418 = vmatpush1.xpose.msra.mxu0 0.0
  %419 = vmatprep.subr.mxu0 0.0
  %420 = vmatpush1.xpose.msra.mxu0 0.0
  %421 = vmatprep.subr.mxu0 0.0
  %422 = vmatpush1.xpose.msra.mxu0 0.0
  %423 = vmatprep.subr.mxu0 0.0
  %424 = vmatpush1.xpose.msra.mxu0 0.0
  %425 = vmatprep.subr.mxu0 0.0
  %426 = vmatpush1.xpose.msra.mxu0 0.0
  %427 = vmatprep.subr.mxu0 0.0
  %428 = vmatpush1.xpose.msra.mxu0 0.0
  %429 = vmatprep.subr.mxu0 0.0
  %430 = vmatpush1.xpose.msra.mxu0 0.0
  %431 = vmatprep.subr.mxu0 0.0
  %432 = vmatpush1.xpose.msra.mxu0 0.0
  %433 = vmatprep.subr.mxu0 0.0
  %434 = vmatpush1.xpose.msra.mxu0 0.0
  %435 = vmatprep.subr.mxu0 0.0
  %436 = vmatpush1.xpose.msra.mxu0 0.0
  %437 = vmatprep.subr.mxu0 0.0
  %438 = vmatpush1.xpose.msra.mxu0 0.0
  %439 = vmatprep.subr.mxu0 0.0
  %440 = vmatpush1.xpose.msra.mxu0 0.0
  %441 = vmatprep.subr.mxu0 0.0
  %442 = vmatpush1.xpose.msra.mxu0 0.0
  %443 = vmatprep.subr.mxu0 0.0
  %444 = vmatpush1.xpose.msra.mxu0 0.0
  %445 = vmatprep.subr.mxu0 0.0
  %446 = vmatpush1.xpose.msra.mxu0 0.0
  %447 = vmatprep.subr.mxu0 0.0
  %448 = vmatpush1.xpose.msra.mxu0 0.0
  %449 = vmatprep.subr.mxu0 0.0
  %450 = vmatpush1.xpose.msra.mxu0 0.0
  %451 = vmatprep.subr.mxu0 0.0
  %452 = vmatpush1.xpose.msra.mxu0 0.0
  %453 = vmatprep.subr.mxu0 0.0
  %454 = vmatpush1.xpose.msra.mxu0 0.0
  %455 = vmatprep.subr.mxu0 0.0
  %456 = vmatpush1.xpose.msra.mxu0 0.0
  %457 = vmatprep.subr.mxu0 0.0
  %458 = vmatpush1.xpose.msra.mxu0 0.0
  %459 = vmatprep.mubr.f32.mxu0 0.0
  %v460 = vand.u32 %v15, 4294901760
  %461 = vmatmul.mubr.f32.gmra.mrb[0].mxu0 %v460
  %v462 = vpop.f32.mrb[0].mxu0
  %v463 = vadd.f32 %v391, %v462
  %v464 = vpop.f32.mrb[0].mxu0
  %465 = vdwg.mxu0
  %vm466 = vcmask 64512
  %467 = vst.msk [vmem:[%s2] sm:$0xff] %vm466, %v463
  // Predicated region
  $region10: #{task_vector_forward.1} parent=0 // pred_check
    _
  $region11: #{task_vector_forward.1} parent=0 // pred_check_branch
    %469 = sbr.rel (0) target = $region13
  $region12: #{task_vector_forward.1} parent=0 // pred_region
    _
  $region13: #{task_vector_forward.1} parent=0 // pred_fallthru
    _
  // Predicated region
  $region14: #{task_vector_forward.1} parent=0 // pred_check
    _
  $region15: #{task_vector_forward.1} parent=0 // pred_check_branch
    %471 = sbr.rel (0) target = $region17
  $region16: #{task_vector_forward.1} parent=0 // pred_region
    _
  $region17: #{task_vector_forward.1} parent=0 // pred_fallthru
    _

</llo_original>
